<compile_context>
chip_gen: v6e
topology: v6e:2x2x1
jax: 0.10.0
libtpu: 0.0.40
codegen_flags: <defaults>
</compile_context>

<pallas_src>
import functools

import jax
import jax.numpy as jnp
import numpy as np
from jax.experimental import pallas as pl
from jax.experimental.pallas import tpu as pltpu


def _parabolic_dilation_kernel(cand_ref, o_ref, *, ks, batch):
    """Masked running max over the ks tap candidates (one lane-dense tile).

    cand_ref: (ks, R, TXp) f32 -- cand[i, r, x] = f_rows[r, x - y_i] + h[r, i]
              wherever the tap is valid (wrapped/padded lanes are discarded by
              the validity mask below).
    o_ref:    (R, TXp)     f32 -- dense (pre-stride) dilation output rows.
    """
    half = ks // 2
    R, TXp = o_ref.shape

    # Lane index; single tile, so local index == global spatial index.
    xg = jax.lax.broadcasted_iota(jnp.int32, (1, TXp), 1)

    # PyTorch loop initialises `max = 0`, so result = max(0, valid candidates);
    # masked-out candidates are replaced by 0, which never lowers the max.
    running = jnp.zeros((R, TXp), jnp.float32)

    for i in range(ks):                        # ks is tiny (3) -> fully unrolled
        y = i - half
        cand = cand_ref[i]                     # (R, TXp)
        mask = None
        if y > 0:                              # lower bound x >= y; trivial for y <= 0
            mask = xg >= y
        ub = batch - 1 + y                     # faithful bug: bound is BATCH size
        if ub < TXp - 1:                       # upper bound, unless it covers the tile
            m2 = xg <= ub
            mask = m2 if mask is None else (mask & m2)
        if mask is not None:
            cand = jnp.where(mask, cand, 0.0)
        running = jnp.maximum(running, cand)

    o_ref[...] = running


def parabolic_pool_1d(f, t, kernel_size=3, stride=2):
    """JAX/Pallas equivalent of ParabolicPool1D.forward."""
    f = f.astype(jnp.float32)
    B, C, X = f.shape
    ks = kernel_size
    half = ks // 2
    K = X // stride

    # ---- parabolic kernel h[c, i] = -z_i[i]^2 / (4 t[c]), shape (C, ks) ------
    z_i = jnp.linspace(-ks // 2 + 1, ks // 2, ks, dtype=jnp.float32)
    h = -(z_i ** 2)[None, :] / (4.0 * t.astype(jnp.float32)[:, None])       # (C, ks)

    # ---- restrict to the rows/columns that can be nonzero AND are read ------
    # Rows: the as_strided gather reads flat indices m = b + c + k*stride
    #   <= max_flat, touching only the first R rows of out.reshape(B*C, X);
    #   row r depends only on f.reshape(B*C, X)[r] and h[r % C].
    # Columns: with max init 0 and the buggy bound 0 <= x - y <= B-1, every
    #   column x > B-1+half is exactly 0, so only Xc = min(X, B+half) columns
    #   need computing; the final gather fills the rest with zeros.
    max_flat = (B - 1) + (C - 1) + stride * max(K - 1, 0)
    R = min(B * C, max_flat // X + 1)
    Xc = min(X, B + half)
    TXp = ((Xc + 127) // 128) * 128            # lane-dense tile width (>= 128)

    f_rows = f.reshape(B * C, X)[:R, :Xc]                                    # (R, Xc)
    f_pad = jnp.pad(f_rows, ((0, 0), (0, TXp - Xc)))                         # (R, TXp)
    c_of_r = jnp.arange(R, dtype=jnp.int32) % C
    h_rows = jnp.take(h, c_of_r, axis=0)                                     # (R, ks)

    # Tap-shifted, h-biased candidates on the tiny slab:
    #   cand[i, r, x] = f_rows[r, x - y_i] + h[r, i]  wherever the tap is valid.
    # Circularly wrapped / padded lanes are exactly the positions the validity
    # mask (0 <= x - y <= B-1) throws away, so no halo is needed.  (When
    # B - 1 >= X the PyTorch reference would index f out of bounds anyway.)
    cands = jnp.stack(
        [jnp.roll(f_pad, i - half, axis=1) + h_rows[:, i][:, None]
         for i in range(ks)], axis=0)                                        # (ks, R, TXp)

    dense_small = pl.pallas_call(
        functools.partial(_parabolic_dilation_kernel, ks=ks, batch=B),
        out_shape=jax.ShapeDtypeStruct((R, TXp), jnp.float32),
        grid=(1,),                              # whole slab is one lane-dense tile
        in_specs=[pl.BlockSpec((ks, R, TXp), lambda i: (0, 0, 0))],
        out_specs=pl.BlockSpec((R, TXp), lambda i: (0, 0)),
        compiler_params=pltpu.CompilerParams(
            dimension_semantics=("arbitrary",)),
    )(cands)

    # ---- torch.as_strided(out, (B, C, K), (1, 1, stride)) over flat storage --
    # result[b, c, k] = out.reshape(-1)[b + c + k*stride]; columns >= Xc of the
    # dense output are provably zero and are synthesised here instead of computed.
    m = (jnp.arange(B, dtype=jnp.int32)[:, None, None]
         + jnp.arange(C, dtype=jnp.int32)[None, :, None]
         + stride * jnp.arange(K, dtype=jnp.int32)[None, None, :])           # (B, C, K)
    r = m // X
    x = m - r * X
    gidx = r * TXp + jnp.minimum(x, Xc - 1)
    vals = jnp.take(dense_small.reshape(-1), gidx.reshape(-1), axis=0).reshape(B, C, K)
    return jnp.where(x < Xc, vals, 0.0)


def _reference_numpy(f, t, ks, stride):
    """Direct port of the PyTorch forward (loops + as_strided), for checking."""
    f = np.asarray(f, dtype=np.float32)
    t = np.asarray(t, dtype=np.float32)
    B, C, X = f.shape
    z_i = np.linspace(-ks // 2 + 1, ks // 2, ks, dtype=np.float32)
    z = np.tile((z_i ** 2)[None, :], (C, 1))
    h = -z / (4.0 * t[:, None])
    out = np.zeros_like(f)
    for b in range(B):
        for c in range(C):
            for x in range(X):
                m = 0.0
                for i in range(ks):
                    y = i - ks // 2
                    if 0 <= x - y <= B - 1:          # bug: bound is batch size
                        tmp = f[b, c, x - y] + h[c, i]
                        if tmp > m:
                            m = tmp
                out[b, c, x] = m
    flat = out.reshape(-1)
    res = np.zeros((B, C, X // stride), dtype=np.float32)
    for b in range(B):
        for c in range(C):
            for k in range(X // stride):
                res[b, c, k] = flat[b * 1 + c * 1 + k * stride]
    return res


if __name__ == "__main__":
    B, C, X = 2, 4, 16
    ks, stride = 3, 2

    key = jax.random.PRNGKey(0)
    kf, kt = jax.random.split(key)
    f = jax.random.normal(kf, (B, C, X), dtype=jnp.float32)
    # Parameter t ~ U[0, 4) (matches torch.nn.init.uniform_(a=0, b=4)).
    t = jax.random.uniform(kt, (C,), minval=0.0, maxval=4.0, dtype=jnp.float32)

    out = parabolic_pool_1d(f, t, kernel_size=ks, stride=stride)
    out = jax.block_until_ready(out)

    ref = _reference_numpy(f, t, ks, stride)
    np.testing.assert_allclose(np.asarray(out), ref, rtol=1e-5, atol=1e-5)
    assert out.shape == (B, C, X // stride)

    print("KERNEL_OK")
</pallas_src>

<mosaic_0001>
module attributes {stable_mosaic.version = 11 : i64} {
  func.func @_parabolic_dilation_kernel(%arg0: i32, %arg1: memref<3x2x128xf32, #tpu.memory_space<vmem>>, %arg2: memref<2x128xf32, #tpu.memory_space<vmem>>) attributes {dimension_semantics = [#tpu.dimension_semantics<arbitrary>], iteration_bounds = array<i64: 1>, scalar_prefetch = 0 : i64, scratch_operands = 0 : i64, tpu.core_type = #tpu.core_type<tc>, window_params = [{pipeline_mode = #tpu.pipeline_mode<synchronous>, transform_indices = @transform_0, window_bounds = array<i64: 3, 2, 128>}, {pipeline_mode = #tpu.pipeline_mode<synchronous>, transform_indices = @transform_1, window_bounds = array<i64: 2, 128>}]} {
    %0 = tpu.iota {dimensions = array<i32: 1>} : vector<1x128xi32>
    %cst = arith.constant 0.000000e+00 : f32
    %1 = vector.broadcast %cst : f32 to vector<2x128xf32>
    %c0 = arith.constant 0 : index
    %c0_0 = arith.constant 0 : index
    %c0_1 = arith.constant 0 : index
    %2 = vector.load %arg1[%c0, %c0_0, %c0_1] : memref<3x2x128xf32, #tpu.memory_space<vmem>>, vector<1x2x128xf32>
    %3 = vector.shape_cast %2 : vector<1x2x128xf32> to vector<2x128xf32>
    %c0_i32 = arith.constant 0 : i32
    %4 = vector.broadcast %c0_i32 : i32 to vector<1x128xi32>
    %5 = arith.cmpi sle, %0, %4 : vector<1x128xi32>
    %cst_2 = arith.constant 0.000000e+00 : f32
    %6 = vector.shape_cast %5 : vector<1x128xi1> to vector<1x128xi1>
    %7 = vector.broadcast %6 : vector<1x128xi1> to vector<2x128xi1>
    %8 = vector.broadcast %cst_2 : f32 to vector<2x128xf32>
    %9 = arith.select %7, %3, %8 : vector<2x128xi1>, vector<2x128xf32>
    %10 = arith.maximumf %1, %9 : vector<2x128xf32>
    %c1 = arith.constant 1 : index
    %c0_3 = arith.constant 0 : index
    %c0_4 = arith.constant 0 : index
    %11 = vector.load %arg1[%c1, %c0_3, %c0_4] : memref<3x2x128xf32, #tpu.memory_space<vmem>>, vector<1x2x128xf32>
    %12 = vector.shape_cast %11 : vector<1x2x128xf32> to vector<2x128xf32>
    %c1_i32 = arith.constant 1 : i32
    %13 = vector.broadcast %c1_i32 : i32 to vector<1x128xi32>
    %14 = arith.cmpi sle, %0, %13 : vector<1x128xi32>
    %cst_5 = arith.constant 0.000000e+00 : f32
    %15 = vector.shape_cast %14 : vector<1x128xi1> to vector<1x128xi1>
    %16 = vector.broadcast %15 : vector<1x128xi1> to vector<2x128xi1>
    %17 = vector.broadcast %cst_5 : f32 to vector<2x128xf32>
    %18 = arith.select %16, %12, %17 : vector<2x128xi1>, vector<2x128xf32>
    %19 = arith.maximumf %10, %18 : vector<2x128xf32>
    %c2 = arith.constant 2 : index
    %c0_6 = arith.constant 0 : index
    %c0_7 = arith.constant 0 : index
    %20 = vector.load %arg1[%c2, %c0_6, %c0_7] : memref<3x2x128xf32, #tpu.memory_space<vmem>>, vector<1x2x128xf32>
    %21 = vector.shape_cast %20 : vector<1x2x128xf32> to vector<2x128xf32>
    %c1_i32_8 = arith.constant 1 : i32
    %22 = vector.broadcast %c1_i32_8 : i32 to vector<1x128xi32>
    %23 = arith.cmpi sge, %0, %22 : vector<1x128xi32>
    %c2_i32 = arith.constant 2 : i32
    %24 = vector.broadcast %c2_i32 : i32 to vector<1x128xi32>
    %25 = arith.cmpi sle, %0, %24 : vector<1x128xi32>
    %26 = arith.andi %23, %25 : vector<1x128xi1>
    %cst_9 = arith.constant 0.000000e+00 : f32
    %27 = vector.shape_cast %26 : vector<1x128xi1> to vector<1x128xi1>
    %28 = vector.broadcast %27 : vector<1x128xi1> to vector<2x128xi1>
    %29 = vector.broadcast %cst_9 : f32 to vector<2x128xf32>
    %30 = arith.select %28, %21, %29 : vector<2x128xi1>, vector<2x128xf32>
    %31 = arith.maximumf %19, %30 : vector<2x128xf32>
    %c0_10 = arith.constant 0 : index
    %c0_11 = arith.constant 0 : index
    %32 = vector.load %arg2[%c0_10, %c0_11] : memref<2x128xf32, #tpu.memory_space<vmem>>, vector<2x128xf32>
    tpu.vector_store %arg2[%c0_10, %c0_11], %31 {strides = array<i32>} : memref<2x128xf32, #tpu.memory_space<vmem>>, vector<2x128xf32>,
    return
  }
  func.func @transform_0(%arg0: i32) -> (i32, i32, i32) {
    %c0_i32 = arith.constant 0 : i32
    %c0_i32_0 = arith.constant 0 : i32
    %c0_i32_1 = arith.constant 0 : i32
    %c0_i32_2 = arith.constant 0 : i32
    return %c0_i32, %c0_i32_0, %c0_i32_1 : i32, i32, i32
  }
  func.func @transform_1(%arg0: i32) -> (i32, i32) {
    %c0_i32 = arith.constant 0 : i32
    %c0_i32_0 = arith.constant 0 : i32
    %c0_i32_1 = arith.constant 0 : i32
    return %c0_i32, %c0_i32_0 : i32, i32
  }
}

</mosaic_0001>

<llo_original>
// kernel: tpu_custom_call.1
$region0: #{tpu_custom_call.1}
  #allocation0 [shape = 'u32[]', space=smem, size = 0x4, offset = 0x4, fixed_abs, tag = 'smem constant byte address 0x4 - core index']
  #allocation1 [shape = 'u32[144,128]{1,0:T(1,128)}', space=vmem, size = 0x12000, scoped, tag = 'internal scratch']
  %s0 = inlined_call_operand.hbm [shape: f32[3,2,128], index: 0, kind: input, shape index: {}]
  %s1 = inlined_call_operand.hbm [shape: f32[2,128], index: 1, kind: output, shape index: {}]
  %s2 = sld [smem:[#allocation0]]
  $region18: #{tpu_custom_call.1} parent=0
    _
  %s4 = ssub.s32 1, %s2
  %s5 = scalar_select 0, %s4, %s2
  $region1: #{tpu_custom_call.1} parent=0
    #allocation2 [shape = 'u8[3072]{0}', space=vmem, size = 0xc00, scoped, tag = 'input window, operand 0, single buffered']
    #allocation3 [shape = 's32[1]{0}', space=sflag, size = 0x4, scoped, tag = 'scoped memory for tpu_custom_call.1']
    #allocation4 [shape = 's32[1]{0}', space=sflag, size = 0x4, scoped, tag = 'scoped memory for tpu_custom_call.1']
    #allocation5 [shape = 'u8[1024]{0}', space=vmem, size = 0x400, scoped, tag = 'output window, operand 0, single buffered']
    %6 = vsyncpa [#allocation3], 0
    %7 = vsyncpa [#allocation4], 0
    // Predicated region
    $region2: #{tpu_custom_call.1} parent=1 // pred_check
      _
    $region3: #{tpu_custom_call.1} parent=1 // pred_check_branch
      %9 = sbr.rel (0) target = $region5
    $region4: #{tpu_custom_call.1} parent=1 // pred_region
      %s11 = ssub.s32 96, 96
      %12 = vsyncadd [#allocation3], %s11
      %s13 = sshll.u32 [#allocation2], 4
      %s14 = int_to_ptr.vmem [resolvable:$true] %s13
      %19 = dma.hbm_to_vmem [thread:$0]  %s0, 96, %s14, [#allocation3], 32, 32, 2
    $region5: #{tpu_custom_call.1} parent=1 // pred_fallthru
      _
    // Predicated region
    $region6: #{tpu_custom_call.1} parent=1 // pred_check
      _
    $region7: #{tpu_custom_call.1} parent=1 // pred_check_branch
      %21 = sbr.rel (0) target = $region9
    $region8: #{tpu_custom_call.1} parent=1 // pred_region
      %22 = dma.done [#allocation3], 96
    $region9: #{tpu_custom_call.1} parent=1 // pred_fallthru
      _
    %v23 = vlaneseq
    %v24 = vand.u32 %v23, 127
    %v25 = vld [vmem:[#allocation2] sm:$0x3]
    %vm26 = vcmp.le.s32.totalorder %v24, 0
    %v27 = vsel %vm26, 1, 0
    %vm28 = vcmp.eq.s32.totalorder %v27, 1
    %v29 = vsel %vm28, %v25, 0.0
    %v30 = vmax.f32 %v29, 0.0
    %s31 = scalar_lea.vmem [#allocation2], 2
    %v32 = vld [vmem:[%s31] sm:$0x3]
    %vm33 = vcmp.le.s32.totalorder %v24, 1
    %v34 = vsel %vm33, 1, 0
    %vm35 = vcmp.eq.s32.totalorder %v34, 1
    %v36 = vsel %vm35, %v32, 0.0
    %v37 = vmax.f32 %v30, %v36
    %s38 = scalar_lea.vmem [#allocation2], 4
    %v39 = vld [vmem:[%s38] sm:$0x3]
    %vm40 = vcmp.ge.s32.totalorder %v24, 1
    %vm41 = vcmp.le.s32.totalorder %v24, 2
    %vm42 = vmand %vm40, %vm41
    %v43 = vsel %vm42, 1, 0
    %vm44 = vcmp.eq.s32.totalorder %v43, 1
    %v45 = vsel %vm44, %v39, 0.0
    %v46 = vmax.f32 %v37, %v45
    %47 = vst [vmem:[#allocation5] sm:$0x3] %v46
    // Predicated region
    $region10: #{tpu_custom_call.1} parent=1 // pred_check
      _
    $region11: #{tpu_custom_call.1} parent=1 // pred_check_branch
      %49 = sbr.rel (0) target = $region13
    $region12: #{tpu_custom_call.1} parent=1 // pred_region
      %s51 = ssub.s32 32, 32
      %52 = vsyncadd [#allocation4], %s51
      %s54 = sshll.u32 [#allocation5], 4
      %s55 = int_to_ptr.vmem [resolvable:$true] %s54
      %57 = dma.vmem_to_hbm [thread:$0]  %s55, 32, %s1, [#allocation4]
    $region13: #{tpu_custom_call.1} parent=1 // pred_fallthru
      _
    // Predicated region
    $region14: #{tpu_custom_call.1} parent=1 // pred_check
      _
    $region15: #{tpu_custom_call.1} parent=1 // pred_check_branch
      %59 = sbr.rel (0) target = $region17
    $region16: #{tpu_custom_call.1} parent=1 // pred_region
      %60 = dma.done [#allocation4], 32
    $region17: #{tpu_custom_call.1} parent=1 // pred_fallthru
      _
    %61 = vsyncpa [#allocation3], 1
    %62 = vsyncpa [#allocation4], 1

</llo_original>
